<compile_context>
chip_gen: v5e
topology: v5e:2x2
jax: 0.10.0
libtpu: 0.0.40
codegen_flags: <defaults>
</compile_context>

<pallas_src>
import math

import jax
import jax.numpy as jnp
from jax.experimental import pallas as pl
from jax.experimental.pallas import tpu as pltpu

DOT_IN_BF16 = False   # False: f32 MXU operands (tight numerics); True: bf16 path
LANES = 128


def _rup(x, m):
    return ((x + m - 1) // m) * m


def slab_layout(text_dim, audio_dim, visual_dim, hidden):
    """Row offsets of each matrix inside the packed [rows, 128] weight slab.

    Every sub-matrix starts on a 16-row boundary so static bf16 slices never
    straddle a packed-sublane tile.
    """
    # TODO(synk): slab assumes 3*hidden <= 128 lanes (true for this small
    # config); widen the slab / split columns for hidden > 42.
    assert 3 * hidden <= LANES, "packed slab assumes 3*hidden <= 128 lanes"
    row_t = 0
    row_a = row_t + _rup(text_dim, 16)
    row_v = row_a + _rup(audio_dim, 16)
    row_w1 = row_v + _rup(visual_dim, 16)
    row_w2 = row_w1 + _rup(3 * hidden, 16)
    rows = _rup(row_w2 + _rup(2 * hidden, 16), 16)
    return dict(row_t=row_t, row_a=row_a, row_v=row_v,
                row_w1=row_w1, row_w2=row_w2, rows=rows)


# ----------------------------------------------------------------------------
# Fused forward kernel
# ----------------------------------------------------------------------------

def _build_kernel(text_dim, audio_dim, visual_dim, hidden, layout):
    H = hidden
    H2, H3 = 2 * hidden, 3 * hidden
    rt, ra, rv = layout["row_t"], layout["row_a"], layout["row_v"]
    rw1, rw2 = layout["row_w1"], layout["row_w2"]
    eps = 1e-5
    dot_dtype = jnp.bfloat16 if DOT_IN_BF16 else jnp.float32

    def layernorm(x, g, b):
        # Two-pass variance (matches the reference; VPU cost is negligible here).
        mu = jnp.mean(x, axis=-1, keepdims=True)
        d = x - mu
        var = jnp.mean(d * d, axis=-1, keepdims=True)
        return d * jax.lax.rsqrt(var + eps) * g + b

    def kernel(xt_ref, xa_ref, xv_ref, w_ref, v_ref, out_ref):
        # Static, 16-row-aligned views into the packed bf16 matrix slab.
        w_t = w_ref[rt:rt + text_dim, 0:H3].astype(dot_dtype)
        w_a = w_ref[ra:ra + audio_dim, 0:H3].astype(dot_dtype)
        w_v = w_ref[rv:rv + visual_dim, 0:H3].astype(dot_dtype)
        w1 = w_ref[rw1:rw1 + H3, 0:H2].astype(dot_dtype)
        w2 = w_ref[rw2:rw2 + H2, 0:H].astype(dot_dtype)

        # f32 vector slab: biases / LN affine params / output head.
        b_ctx = v_ref[0:1, 0:H3]
        b1, g1, be1 = v_ref[1:2, 0:H2], v_ref[2:3, 0:H2], v_ref[3:4, 0:H2]
        b2, g2, be2 = v_ref[4:5, 0:H], v_ref[5:6, 0:H], v_ref[6:7, 0:H]
        wo_row = v_ref[7:8, 0:H]            # output head weight, stored transposed
        bo = v_ref[7:8, H:H + 1]

        xt = xt_ref[...].astype(dot_dtype)
        xa = xa_ref[...].astype(dot_dtype)
        xv = xv_ref[...].astype(dot_dtype)

        # Modality projections + all six (seq_len==1, degenerate-softmax)
        # cross-attention blocks + residual adds, pre-folded offline into one
        # dense affine map per modality.
        # TODO(synk): attention / fusion dropout is identity in eval mode.
        ctx = (jnp.dot(xt, w_t, preferred_element_type=jnp.float32)
               + jnp.dot(xa, w_a, preferred_element_type=jnp.float32)
               + jnp.dot(xv, w_v, preferred_element_type=jnp.float32)
               + b_ctx)

        # Fusion layer: Linear -> LayerNorm -> ReLU, twice (f32 VPU/EUP math).
        h = jnp.dot(ctx.astype(dot_dtype), w1,
                    preferred_element_type=jnp.float32) + b1
        h = jnp.maximum(layernorm(h, g1, be1), 0.0)
        h2 = jnp.dot(h.astype(dot_dtype), w2,
                     preferred_element_type=jnp.float32) + b2
        h2 = jnp.maximum(layernorm(h2, g2, be2), 0.0)

        # Output head as a lane reduction (avoids a 1-lane masked MXU output).
        sent = jnp.sum(h2 * wo_row, axis=-1, keepdims=True) + bo

        # Single lane-dense store: fused in lanes [0:H), sentiment in lane H.
        pad = jnp.zeros((h2.shape[0], LANES - H - 1), jnp.float32)
        out_ref[...] = jnp.concatenate([h2, sent, pad], axis=-1)

    return kernel


def make_forward(text_dim, audio_dim, visual_dim, hidden):
    layout = slab_layout(text_dim, audio_dim, visual_dim, hidden)
    H = hidden

    @jax.jit
    def forward(w_slab, v_slab, text, audio, visual):
        # The offline fold is only valid for seq_len == 1 per-modality feature
        # vectors (the PyTorch module's unsqueeze(1) path) in eval mode.
        assert text.ndim == 2 and audio.ndim == 2 and visual.ndim == 2

        B = text.shape[0]
        block_b = B if B <= 512 else 512          # don't split tiny batches
        grid = (pl.cdiv(B, block_b),)

        kernel = _build_kernel(text_dim, audio_dim, visual_dim, hidden, layout)

        d_in = text_dim + audio_dim + visual_dim
        flops = 2 * B * (d_in * 3 * H + 3 * H * 2 * H + 2 * H * H + H)
        bytes_accessed = (layout["rows"] * LANES * 2      # bf16 matrix slab
                          + 8 * LANES * 4                 # f32 vector slab
                          + B * d_in * 4 + B * LANES * 4) # inputs + packed out

        out = pl.pallas_call(
            kernel,
            out_shape=jax.ShapeDtypeStruct((B, LANES), jnp.float32),
            grid=grid,
            in_specs=[
                pl.BlockSpec((block_b, text_dim), lambda i: (i, 0)),
                pl.BlockSpec((block_b, audio_dim), lambda i: (i, 0)),
                pl.BlockSpec((block_b, visual_dim), lambda i: (i, 0)),
                # Weight slabs: constant index_map -> DMA'd once, resident
                # across the whole batch grid.
                pl.BlockSpec((layout["rows"], LANES), lambda i: (0, 0)),
                pl.BlockSpec((8, LANES), lambda i: (0, 0)),
            ],
            out_specs=pl.BlockSpec((block_b, LANES), lambda i: (i, 0)),
            compiler_params=pltpu.CompilerParams(
                dimension_semantics=("parallel",)),
            cost_estimate=pl.CostEstimate(
                flops=flops, transcendentals=2 * B,
                bytes_accessed=bytes_accessed),
        )(text, audio, visual, w_slab, v_slab)

        fused = out[:, :H]
        sentiment = out[:, H:H + 1]
        return fused, sentiment

    return forward


# ----------------------------------------------------------------------------
# Parameter init (deterministic, PyTorch-Linear-style uniform bounds)
# ----------------------------------------------------------------------------

def init_linear(key, fan_in, fan_out):
    k1, k2 = jax.random.split(key)
    bound = 1.0 / math.sqrt(fan_in)
    w = jax.random.uniform(k1, (fan_in, fan_out), jnp.float32, -bound, bound)
    b = jax.random.uniform(k2, (1, fan_out), jnp.float32, -bound, bound)
    return w, b


def init_cross_attn(key, hidden):
    ks = jax.random.split(key, 4)
    wq, bq = init_linear(ks[0], hidden, hidden)   # dead at seq_len == 1
    wk, bk = init_linear(ks[1], hidden, hidden)   # dead at seq_len == 1
    wv, bv = init_linear(ks[2], hidden, hidden)
    wo, bo = init_linear(ks[3], hidden, hidden)
    return dict(wq=wq, bq=bq, wk=wk, bk=bk, wv=wv, bv=bv, wo=wo, bo=bo)


def init_params(key, text_dim, audio_dim, visual_dim, hidden):
    ks = jax.random.split(key, 12)
    params = {
        "text_proj": init_linear(ks[0], text_dim, hidden),
        "audio_proj": init_linear(ks[1], audio_dim, hidden),
        "visual_proj": init_linear(ks[2], visual_dim, hidden),
        "text_audio_attn": init_cross_attn(ks[3], hidden),
        "text_visual_attn": init_cross_attn(ks[4], hidden),
        "audio_text_attn": init_cross_attn(ks[5], hidden),
        "audio_visual_attn": init_cross_attn(ks[6], hidden),
        "visual_text_attn": init_cross_attn(ks[7], hidden),
        "visual_audio_attn": init_cross_attn(ks[8], hidden),
    }
    w1, b1 = init_linear(ks[9], hidden * 3, hidden * 2)
    w2, b2 = init_linear(ks[10], hidden * 2, hidden)
    params["fusion"] = dict(
        w1=w1, b1=b1,
        g1=jnp.ones((1, hidden * 2), jnp.float32),
        be1=jnp.zeros((1, hidden * 2), jnp.float32),
        w2=w2, b2=b2,
        g2=jnp.ones((1, hidden), jnp.float32),
        be2=jnp.zeros((1, hidden), jnp.float32),
    )
    wo, bo = init_linear(ks[11], hidden, 1)
    params["output_proj"] = dict(w=wo, b=bo)
    return params


# ----------------------------------------------------------------------------
# Offline parameter folding + slab packing (done once, outside the hot path)
# ----------------------------------------------------------------------------

def fold_params(params, text_dim, audio_dim, visual_dim, hidden):
    """Fold projections + degenerate attention + residuals into one dense
    affine map per modality and pack everything into two slabs.

    Valid because each CrossAttention sees seq_len == 1 (softmax over a
    length-1 key axis is identically 1.0, so Wq/Wk/scale and the per-head
    split are dead) and dropout is eval-mode identity.
    """
    H = hidden
    hp = jax.lax.Precision.HIGHEST
    layout = slab_layout(text_dim, audio_dim, visual_dim, hidden)

    def fold_block(p):   # one degenerate attention block -> (W, b)
        w = jnp.dot(p["wv"], p["wo"], precision=hp)
        b = jnp.dot(p["bv"], p["wo"], precision=hp) + p["bo"]
        return w, b

    w_ta, b_ta = fold_block(params["text_audio_attn"])    # text_ctx   <- audio_proj
    w_tv, b_tv = fold_block(params["text_visual_attn"])   # text_ctx   <- visual_proj
    w_at, b_at = fold_block(params["audio_text_attn"])    # audio_ctx  <- text_proj
    w_av, b_av = fold_block(params["audio_visual_attn"])  # audio_ctx  <- visual_proj
    w_vt, b_vt = fold_block(params["visual_text_attn"])   # visual_ctx <- text_proj
    w_va, b_va = fold_block(params["visual_audio_attn"])  # visual_ctx <- audio_proj

    # M = I_{3H} + W_attn, split into its three row blocks (kv source).
    eye = jnp.eye(H, dtype=jnp.float32)
    m_t = jnp.concatenate([eye, w_at, w_vt], axis=1)   # text_proj   -> [t|a|v] ctx
    m_a = jnp.concatenate([w_ta, eye, w_va], axis=1)   # audio_proj  -> [t|a|v] ctx
    m_v = jnp.concatenate([w_tv, w_av, eye], axis=1)   # visual_proj -> [t|a|v] ctx
    b_attn = jnp.concatenate([b_ta + b_tv, b_at + b_av, b_vt + b_va], axis=1)

    wt, bt = params["text_proj"]
    wa, ba = params["audio_proj"]
    wv, bv = params["visual_proj"]
    w_text_c = jnp.dot(wt, m_t, precision=hp)          # [Dt, 3H], dense
    w_audio_c = jnp.dot(wa, m_a, precision=hp)         # [Da, 3H], dense
    w_vis_c = jnp.dot(wv, m_v, precision=hp)           # [Dv, 3H], dense
    b_ctx = (jnp.dot(bt, m_t, precision=hp) + jnp.dot(ba, m_a, precision=hp)
             + jnp.dot(bv, m_v, precision=hp) + b_attn)

    f = params["fusion"]
    o = params["output_proj"]
    rt, ra, rv = layout["row_t"], layout["row_a"], layout["row_v"]
    rw1, rw2 = layout["row_w1"], layout["row_w2"]

    # bf16 matrix slab (one DMA, half the f32 traffic).
    w_slab = jnp.zeros((layout["rows"], LANES), jnp.float32)
    w_slab = w_slab.at[rt:rt + text_dim, 0:3 * H].set(w_text_c)
    w_slab = w_slab.at[ra:ra + audio_dim, 0:3 * H].set(w_audio_c)
    w_slab = w_slab.at[rv:rv + visual_dim, 0:3 * H].set(w_vis_c)
    w_slab = w_slab.at[rw1:rw1 + 3 * H, 0:2 * H].set(f["w1"])
    w_slab = w_slab.at[rw2:rw2 + 2 * H, 0:H].set(f["w2"])
    w_slab = w_slab.astype(jnp.bfloat16)

    # f32 vector slab (biases / LN affine / output head).
    v_slab = jnp.zeros((8, LANES), jnp.float32)
    v_slab = v_slab.at[0, 0:3 * H].set(b_ctx[0])
    v_slab = v_slab.at[1, 0:2 * H].set(f["b1"][0])
    v_slab = v_slab.at[2, 0:2 * H].set(f["g1"][0])
    v_slab = v_slab.at[3, 0:2 * H].set(f["be1"][0])
    v_slab = v_slab.at[4, 0:H].set(f["b2"][0])
    v_slab = v_slab.at[5, 0:H].set(f["g2"][0])
    v_slab = v_slab.at[6, 0:H].set(f["be2"][0])
    v_slab = v_slab.at[7, 0:H].set(o["w"][:, 0])       # wo^T as a row
    v_slab = v_slab.at[7, H].set(o["b"][0, 0])
    return w_slab, v_slab


# ----------------------------------------------------------------------------
# Pure-JAX reference (unfolded, mirrors the PyTorch module at seq_len == 1)
# ----------------------------------------------------------------------------

def reference_forward(params, text, audio, visual):
    hp = jax.lax.Precision.HIGHEST

    def lin(x, w, b):
        return jnp.dot(x, w, precision=hp) + b

    def attn(kv, p):
        # softmax over a length-1 key axis == 1.0; dropout is eval-mode identity
        v = lin(kv, p["wv"], p["bv"])
        return lin(v, p["wo"], p["bo"])

    def layernorm(x, g, b):
        mu = jnp.mean(x, axis=-1, keepdims=True)
        var = jnp.mean((x - mu) ** 2, axis=-1, keepdims=True)
        return (x - mu) / jnp.sqrt(var + 1e-5) * g + b

    tp = lin(text, *params["text_proj"])
    ap = lin(audio, *params["audio_proj"])
    vp = lin(visual, *params["visual_proj"])

    text_ctx = tp + attn(ap, params["text_audio_attn"]) + attn(vp, params["text_visual_attn"])
    audio_ctx = ap + attn(tp, params["audio_text_attn"]) + attn(vp, params["audio_visual_attn"])
    visual_ctx = vp + attn(tp, params["visual_text_attn"]) + attn(ap, params["visual_audio_attn"])

    concat = jnp.concatenate([text_ctx, audio_ctx, visual_ctx], axis=1)
    f = params["fusion"]
    h = jnp.maximum(layernorm(lin(concat, f["w1"], f["b1"]), f["g1"], f["be1"]), 0.0)
    h2 = jnp.maximum(layernorm(lin(h, f["w2"], f["b2"]), f["g2"], f["be2"]), 0.0)
    sent = lin(h2, params["output_proj"]["w"], params["output_proj"]["b"])
    return h2, sent


# ----------------------------------------------------------------------------
# Main
# ----------------------------------------------------------------------------

if __name__ == "__main__":
    B = 2
    TEXT_DIM, AUDIO_DIM, VISUAL_DIM = 40, 24, 16
    HIDDEN, NUM_HEADS = 32, 8

    root = jax.random.PRNGKey(0)
    pkey, tkey, akey, vkey = jax.random.split(root, 4)

    params = init_params(pkey, TEXT_DIM, AUDIO_DIM, VISUAL_DIM, HIDDEN)
    w_slab, v_slab = fold_params(params, TEXT_DIM, AUDIO_DIM, VISUAL_DIM, HIDDEN)

    text_features = jax.random.normal(tkey, (B, TEXT_DIM), jnp.float32)
    audio_features = jax.random.normal(akey, (B, AUDIO_DIM), jnp.float32)
    visual_features = jax.random.normal(vkey, (B, VISUAL_DIM), jnp.float32)

    forward = make_forward(TEXT_DIM, AUDIO_DIM, VISUAL_DIM, HIDDEN)
    fused, sentiment = forward(w_slab, v_slab,
                               text_features, audio_features, visual_features)
    jax.block_until_ready((fused, sentiment))

    assert fused.shape == (B, HIDDEN)
    assert sentiment.shape == (B, 1)
    assert bool(jnp.all(jnp.isfinite(fused))) and bool(jnp.all(jnp.isfinite(sentiment)))

    # Numerical check against the unfolded pure-f32 reference.  bf16 weight
    # storage (per the perf review) introduces ~1e-2-level deviations on O(1)
    # activations, hence the 5e-2 absolute tolerance.
    ref_fused, ref_sent = reference_forward(
        params, text_features, audio_features, visual_features)
    assert float(jnp.max(jnp.abs(fused - ref_fused))) < 5e-2
    assert float(jnp.max(jnp.abs(sentiment - ref_sent))) < 5e-2

    print("KERNEL_OK")
</pallas_src>

<mosaic_0001>
module attributes {stable_mosaic.version = 11 : i64} {
  func.func @kernel(%arg0: i32, %arg1: memref<2x40xf32, #tpu.memory_space<vmem>>, %arg2: memref<2x24xf32, #tpu.memory_space<vmem>>, %arg3: memref<2x16xf32, #tpu.memory_space<vmem>>, %arg4: memref<256x128xbf16, #tpu.memory_space<vmem>>, %arg5: memref<8x128xf32, #tpu.memory_space<vmem>>, %arg6: memref<2x128xf32, #tpu.memory_space<vmem>>) attributes {dimension_semantics = [#tpu.dimension_semantics<parallel>], iteration_bounds = array<i64: 1>, scalar_prefetch = 0 : i64, scratch_operands = 0 : i64, tpu.core_type = #tpu.core_type<tc>, window_params = [{transform_indices = @transform_0, window_bounds = array<i64: 2, 40>}, {transform_indices = @transform_1, window_bounds = array<i64: 2, 24>}, {transform_indices = @transform_2, window_bounds = array<i64: 2, 16>}, {pipeline_mode = #tpu.pipeline_mode<synchronous>, transform_indices = @transform_3, window_bounds = array<i64: 256, 128>}, {pipeline_mode = #tpu.pipeline_mode<synchronous>, transform_indices = @transform_4, window_bounds = array<i64: 8, 128>}, {transform_indices = @transform_5, window_bounds = array<i64: 2, 128>}]} {
    %c0 = arith.constant 0 : index
    %c0_0 = arith.constant 0 : index
    %0 = vector.load %arg4[%c0, %c0_0] : memref<256x128xbf16, #tpu.memory_space<vmem>>, vector<40x96xbf16>
    %1 = arith.extf %0 : vector<40x96xbf16> to vector<40x96xf32>
    %c48 = arith.constant 48 : index
    %c0_1 = arith.constant 0 : index
    %2 = vector.load %arg4[%c48, %c0_1] : memref<256x128xbf16, #tpu.memory_space<vmem>>, vector<24x96xbf16>
    %3 = arith.extf %2 : vector<24x96xbf16> to vector<24x96xf32>
    %c80 = arith.constant 80 : index
    %c0_2 = arith.constant 0 : index
    %4 = vector.load %arg4[%c80, %c0_2] : memref<256x128xbf16, #tpu.memory_space<vmem>>, vector<16x96xbf16>
    %5 = arith.extf %4 : vector<16x96xbf16> to vector<16x96xf32>
    %c96 = arith.constant 96 : index
    %c0_3 = arith.constant 0 : index
    %6 = vector.load %arg4[%c96, %c0_3] : memref<256x128xbf16, #tpu.memory_space<vmem>>, vector<96x64xbf16>
    %7 = arith.extf %6 : vector<96x64xbf16> to vector<96x64xf32>
    %c192 = arith.constant 192 : index
    %c0_4 = arith.constant 0 : index
    %8 = vector.load %arg4[%c192, %c0_4] : memref<256x128xbf16, #tpu.memory_space<vmem>>, vector<64x32xbf16>
    %9 = arith.extf %8 : vector<64x32xbf16> to vector<64x32xf32>
    %c0_5 = arith.constant 0 : index
    %c0_6 = arith.constant 0 : index
    %10 = vector.load %arg5[%c0_5, %c0_6] : memref<8x128xf32, #tpu.memory_space<vmem>>, vector<1x96xf32>
    %c1 = arith.constant 1 : index
    %c0_7 = arith.constant 0 : index
    %11 = vector.load %arg5[%c1, %c0_7] : memref<8x128xf32, #tpu.memory_space<vmem>>, vector<1x64xf32>
    %c2 = arith.constant 2 : index
    %c0_8 = arith.constant 0 : index
    %12 = vector.load %arg5[%c2, %c0_8] : memref<8x128xf32, #tpu.memory_space<vmem>>, vector<1x64xf32>
    %c3 = arith.constant 3 : index
    %c0_9 = arith.constant 0 : index
    %13 = vector.load %arg5[%c3, %c0_9] : memref<8x128xf32, #tpu.memory_space<vmem>>, vector<1x64xf32>
    %c4 = arith.constant 4 : index
    %c0_10 = arith.constant 0 : index
    %14 = vector.load %arg5[%c4, %c0_10] : memref<8x128xf32, #tpu.memory_space<vmem>>, vector<1x32xf32>
    %c5 = arith.constant 5 : index
    %c0_11 = arith.constant 0 : index
    %15 = vector.load %arg5[%c5, %c0_11] : memref<8x128xf32, #tpu.memory_space<vmem>>, vector<1x32xf32>
    %c6 = arith.constant 6 : index
    %c0_12 = arith.constant 0 : index
    %16 = vector.load %arg5[%c6, %c0_12] : memref<8x128xf32, #tpu.memory_space<vmem>>, vector<1x32xf32>
    %c7 = arith.constant 7 : index
    %c0_13 = arith.constant 0 : index
    %17 = vector.load %arg5[%c7, %c0_13] : memref<8x128xf32, #tpu.memory_space<vmem>>, vector<1x32xf32>
    %c7_14 = arith.constant 7 : index
    %c32 = arith.constant 32 : index
    %18 = vector.load %arg5[%c7_14, %c32] : memref<8x128xf32, #tpu.memory_space<vmem>>, vector<1x1xf32>
    %c0_15 = arith.constant 0 : index
    %c0_16 = arith.constant 0 : index
    %19 = vector.load %arg1[%c0_15, %c0_16] : memref<2x40xf32, #tpu.memory_space<vmem>>, vector<2x40xf32>
    %c0_17 = arith.constant 0 : index
    %c0_18 = arith.constant 0 : index
    %20 = vector.load %arg2[%c0_17, %c0_18] : memref<2x24xf32, #tpu.memory_space<vmem>>, vector<2x24xf32>
    %c0_19 = arith.constant 0 : index
    %c0_20 = arith.constant 0 : index
    %21 = vector.load %arg3[%c0_19, %c0_20] : memref<2x16xf32, #tpu.memory_space<vmem>>, vector<2x16xf32>
    %cst = arith.constant dense<0.000000e+00> : vector<2x96xf32>
    %22 = tpu.matmul %19, %1, %cst {dimension_numbers = #tpu.dot_dimension_numbers<[1], [0], [0], [1], [0, 0, 1, 1], [], []>} : vector<2x40xf32>, vector<40x96xf32>, vector<2x96xf32> -> vector<2x96xf32>
    %cst_21 = arith.constant dense<0.000000e+00> : vector<2x96xf32>
    %23 = tpu.matmul %20, %3, %cst_21 {dimension_numbers = #tpu.dot_dimension_numbers<[1], [0], [0], [1], [0, 0, 1, 1], [], []>} : vector<2x24xf32>, vector<24x96xf32>, vector<2x96xf32> -> vector<2x96xf32>
    %24 = arith.addf %22, %23 : vector<2x96xf32>
    %cst_22 = arith.constant dense<0.000000e+00> : vector<2x96xf32>
    %25 = tpu.matmul %21, %5, %cst_22 {dimension_numbers = #tpu.dot_dimension_numbers<[1], [0], [0], [1], [0, 0, 1, 1], [], []>} : vector<2x16xf32>, vector<16x96xf32>, vector<2x96xf32> -> vector<2x96xf32>
    %26 = arith.addf %24, %25 : vector<2x96xf32>
    %27 = vector.broadcast %10 : vector<1x96xf32> to vector<2x96xf32>
    %28 = arith.addf %26, %27 : vector<2x96xf32>
    %cst_23 = arith.constant dense<0.000000e+00> : vector<2x64xf32>
    %29 = tpu.matmul %28, %7, %cst_23 {dimension_numbers = #tpu.dot_dimension_numbers<[1], [0], [0], [1], [0, 0, 1, 1], [], []>} : vector<2x96xf32>, vector<96x64xf32>, vector<2x64xf32> -> vector<2x64xf32>
    %30 = vector.broadcast %11 : vector<1x64xf32> to vector<2x64xf32>
    %31 = arith.addf %29, %30 : vector<2x64xf32>
    %cst_24 = arith.constant dense<0.000000e+00> : vector<2xf32>
    %32 = vector.multi_reduction <add>, %31, %cst_24 [1] : vector<2x64xf32> to vector<2xf32>
    %33 = vector.shape_cast %32 : vector<2xf32> to vector<2x1xf32>
    %cst_25 = arith.constant 6.400000e+01 : f32
    %34 = vector.broadcast %cst_25 : f32 to vector<2x1xf32>
    %35 = arith.divf %33, %34 : vector<2x1xf32>
    %36 = vector.broadcast %35 : vector<2x1xf32> to vector<2x64xf32>
    %37 = arith.subf %31, %36 : vector<2x64xf32>
    %38 = arith.mulf %37, %37 : vector<2x64xf32>
    %cst_26 = arith.constant dense<0.000000e+00> : vector<2xf32>
    %39 = vector.multi_reduction <add>, %38, %cst_26 [1] : vector<2x64xf32> to vector<2xf32>
    %40 = vector.shape_cast %39 : vector<2xf32> to vector<2x1xf32>
    %cst_27 = arith.constant 6.400000e+01 : f32
    %41 = vector.broadcast %cst_27 : f32 to vector<2x1xf32>
    %42 = arith.divf %40, %41 : vector<2x1xf32>
    %cst_28 = arith.constant 9.99999974E-6 : f32
    %43 = vector.broadcast %cst_28 : f32 to vector<2x1xf32>
    %44 = arith.addf %42, %43 : vector<2x1xf32>
    %45 = math.rsqrt %44 : vector<2x1xf32>
    %46 = vector.broadcast %45 : vector<2x1xf32> to vector<2x64xf32>
    %47 = arith.mulf %37, %46 : vector<2x64xf32>
    %48 = vector.broadcast %12 : vector<1x64xf32> to vector<2x64xf32>
    %49 = arith.mulf %47, %48 : vector<2x64xf32>
    %50 = vector.broadcast %13 : vector<1x64xf32> to vector<2x64xf32>
    %51 = arith.addf %49, %50 : vector<2x64xf32>
    %cst_29 = arith.constant 0.000000e+00 : f32
    %52 = vector.broadcast %cst_29 : f32 to vector<2x64xf32>
    %53 = arith.maximumf %51, %52 : vector<2x64xf32>
    %cst_30 = arith.constant dense<0.000000e+00> : vector<2x32xf32>
    %54 = tpu.matmul %53, %9, %cst_30 {dimension_numbers = #tpu.dot_dimension_numbers<[1], [0], [0], [1], [0, 0, 1, 1], [], []>} : vector<2x64xf32>, vector<64x32xf32>, vector<2x32xf32> -> vector<2x32xf32>
    %55 = vector.broadcast %14 : vector<1x32xf32> to vector<2x32xf32>
    %56 = arith.addf %54, %55 : vector<2x32xf32>
    %cst_31 = arith.constant dense<0.000000e+00> : vector<2xf32>
    %57 = vector.multi_reduction <add>, %56, %cst_31 [1] : vector<2x32xf32> to vector<2xf32>
    %58 = vector.shape_cast %57 : vector<2xf32> to vector<2x1xf32>
    %cst_32 = arith.constant 3.200000e+01 : f32
    %59 = vector.broadcast %cst_32 : f32 to vector<2x1xf32>
    %60 = arith.divf %58, %59 : vector<2x1xf32>
    %61 = vector.broadcast %60 : vector<2x1xf32> to vector<2x32xf32>
    %62 = arith.subf %56, %61 : vector<2x32xf32>
    %63 = arith.mulf %62, %62 : vector<2x32xf32>
    %cst_33 = arith.constant dense<0.000000e+00> : vector<2xf32>
    %64 = vector.multi_reduction <add>, %63, %cst_33 [1] : vector<2x32xf32> to vector<2xf32>
    %65 = vector.shape_cast %64 : vector<2xf32> to vector<2x1xf32>
    %cst_34 = arith.constant 3.200000e+01 : f32
    %66 = vector.broadcast %cst_34 : f32 to vector<2x1xf32>
    %67 = arith.divf %65, %66 : vector<2x1xf32>
    %cst_35 = arith.constant 9.99999974E-6 : f32
    %68 = vector.broadcast %cst_35 : f32 to vector<2x1xf32>
    %69 = arith.addf %67, %68 : vector<2x1xf32>
    %70 = math.rsqrt %69 : vector<2x1xf32>
    %71 = vector.broadcast %70 : vector<2x1xf32> to vector<2x32xf32>
    %72 = arith.mulf %62, %71 : vector<2x32xf32>
    %73 = vector.broadcast %15 : vector<1x32xf32> to vector<2x32xf32>
    %74 = arith.mulf %72, %73 : vector<2x32xf32>
    %75 = vector.broadcast %16 : vector<1x32xf32> to vector<2x32xf32>
    %76 = arith.addf %74, %75 : vector<2x32xf32>
    %cst_36 = arith.constant 0.000000e+00 : f32
    %77 = vector.broadcast %cst_36 : f32 to vector<2x32xf32>
    %78 = arith.maximumf %76, %77 : vector<2x32xf32>
    %79 = vector.broadcast %17 : vector<1x32xf32> to vector<2x32xf32>
    %80 = arith.mulf %78, %79 : vector<2x32xf32>
    %cst_37 = arith.constant dense<0.000000e+00> : vector<2xf32>
    %81 = vector.multi_reduction <add>, %80, %cst_37 [1] : vector<2x32xf32> to vector<2xf32>
    %82 = vector.shape_cast %81 : vector<2xf32> to vector<2x1xf32>
    %83 = vector.broadcast %18 : vector<1x1xf32> to vector<2x1xf32>
    %84 = arith.addf %82, %83 : vector<2x1xf32>
    %cst_38 = arith.constant 0.000000e+00 : f32
    %85 = vector.broadcast %cst_38 : f32 to vector<2x95xf32>
    %86 = tpu.concatenate %78, %84, %85 in 1 : vector<2x32xf32>, vector<2x1xf32>, vector<2x95xf32> -> vector<2x128xf32>
    %c0_39 = arith.constant 0 : index
    %c0_40 = arith.constant 0 : index
    %87 = vector.load %arg6[%c0_39, %c0_40] : memref<2x128xf32, #tpu.memory_space<vmem>>, vector<2x128xf32>
    tpu.vector_store %arg6[%c0_39, %c0_40], %86 {strides = array<i32>} : memref<2x128xf32, #tpu.memory_space<vmem>>, vector<2x128xf32>,
    return
  }
  func.func @transform_0(%arg0: i32) -> (i32, i32) {
    %c0_i32 = arith.constant 0 : i32
    %c0_i32_0 = arith.constant 0 : i32
    return %arg0, %c0_i32 : i32, i32
  }
  func.func @transform_1(%arg0: i32) -> (i32, i32) {
    %c0_i32 = arith.constant 0 : i32
    %c0_i32_0 = arith.constant 0 : i32
    return %arg0, %c0_i32 : i32, i32
  }
  func.func @transform_2(%arg0: i32) -> (i32, i32) {
    %c0_i32 = arith.constant 0 : i32
    %c0_i32_0 = arith.constant 0 : i32
    return %arg0, %c0_i32 : i32, i32
  }
  func.func @transform_3(%arg0: i32) -> (i32, i32) {
    %c0_i32 = arith.constant 0 : i32
    %c0_i32_0 = arith.constant 0 : i32
    %c0_i32_1 = arith.constant 0 : i32
    return %c0_i32, %c0_i32_0 : i32, i32
  }
  func.func @transform_4(%arg0: i32) -> (i32, i32) {
    %c0_i32 = arith.constant 0 : i32
    %c0_i32_0 = arith.constant 0 : i32
    %c0_i32_1 = arith.constant 0 : i32
    return %c0_i32, %c0_i32_0 : i32, i32
  }
  func.func @transform_5(%arg0: i32) -> (i32, i32) {
    %c0_i32 = arith.constant 0 : i32
    %c0_i32_0 = arith.constant 0 : i32
    return %arg0, %c0_i32 : i32, i32
  }
}

</mosaic_0001>

<llo_original>
// kernel: forward.1
$region0: #{forward.1}
  #allocation0 [shape = 'u32[]', space=smem, size = 0x4, offset = 0x4, fixed_abs, tag = 'smem constant byte address 0x4 - core index']
  #allocation1 [shape = 'u32[72,128]{1,0:T(1,128)}', space=vmem, size = 0x9000, scoped, tag = 'internal scratch']
  %s0 = inlined_call_operand.hbm [shape: f32[2,40], index: 0, kind: input, shape index: {}]
  %s1 = inlined_call_operand.vmem [shape: f32[2,24], index: 1, kind: input, shape index: {}]
  %s2 = inlined_call_operand.hbm [shape: f32[2,16], index: 2, kind: input, shape index: {}]
  %s3 = inlined_call_operand.hbm [shape: bf16[256,128], index: 3, kind: input, shape index: {}]
  %s4 = inlined_call_operand.hbm [shape: f32[8,128], index: 4, kind: input, shape index: {}]
  %s5 = inlined_call_operand.vmem [shape: f32[2,128], index: 5, kind: output, shape index: {}]
  %s6 = sld [smem:[#allocation0]]
  $region46: #{forward.1} parent=0
    _
  %s8 = ssub.s32 1, %s6
  %s9 = scalar_select 0, %s8, %s6
  $region1: #{forward.1} parent=0
    #allocation2 [shape = 'u8[1024]{0}', space=vmem, size = 0x400, scoped, tag = 'input window, operand 0, single buffered']
    #allocation3 [shape = 's32[1]{0}', space=sflag, size = 0x4, scoped, tag = 'scoped memory for forward.1']
    #allocation4 [shape = 'u8[1024]{0}', space=vmem, size = 0x400, scoped, tag = 'input window, operand 2, single buffered']
    #allocation5 [shape = 's32[1]{0}', space=sflag, size = 0x4, scoped, tag = 'scoped memory for forward.1']
    #allocation6 [shape = 'u8[65536]{0}', space=vmem, size = 0x10000, scoped, tag = 'input window, operand 3, single buffered']
    #allocation7 [shape = 'u8[4096]{0}', space=vmem, size = 0x1000, scoped, tag = 'input window, operand 4, single buffered']
    #allocation8 [shape = 's32[1]{0}', space=sflag, size = 0x4, scoped, tag = 'scoped memory for forward.1']
    %10 = vsyncpa [#allocation3], 0
    %11 = vsyncpa [#allocation5], 0
    %12 = vsyncpa [#allocation8], 0
    // Predicated region
    $region2: #{forward.1} parent=1 // pred_check
      _
    $region3: #{forward.1} parent=1 // pred_check_branch
      %14 = sbr.rel (0) target = $region5
    $region4: #{forward.1} parent=1 // pred_region
      %16 = vsyncadd [#allocation3], 0
      %s18 = sshll.u32 %s0, 4
      %s19 = int_to_ptr.hbm [resolvable:$true] %s18
      %s20 = sshll.u32 [#allocation2], 4
      %s21 = int_to_ptr.vmem [resolvable:$true] %s20
      %23 = dma.hbm_to_vmem [thread:$0]  %s19, 32, %s21, [#allocation3]
    $region5: #{forward.1} parent=1 // pred_fallthru
      _
    // Predicated region
    $region6: #{forward.1} parent=1 // pred_check
      _
    $region7: #{forward.1} parent=1 // pred_check_branch
      %25 = sbr.rel (0) target = $region9
    $region8: #{forward.1} parent=1 // pred_region
      _
    $region9: #{forward.1} parent=1 // pred_fallthru
      _
    // Predicated region
    $region10: #{forward.1} parent=1 // pred_check
      _
    $region11: #{forward.1} parent=1 // pred_check_branch
      %27 = sbr.rel (0) target = $region13
    $region12: #{forward.1} parent=1 // pred_region
      %29 = vsyncadd [#allocation5], 0
      %s31 = sshll.u32 %s2, 4
      %s32 = int_to_ptr.hbm [resolvable:$true] %s31
      %s33 = sshll.u32 [#allocation4], 4
      %s34 = int_to_ptr.vmem [resolvable:$true] %s33
      %36 = dma.hbm_to_vmem [thread:$0]  %s32, 32, %s34, [#allocation5]
    $region13: #{forward.1} parent=1 // pred_fallthru
      _
    // Predicated region
    $region14: #{forward.1} parent=1 // pred_check
      _
    $region15: #{forward.1} parent=1 // pred_check_branch
      %38 = sbr.rel (0) target = $region17
    $region16: #{forward.1} parent=1 // pred_region
      %40 = vsyncadd [#allocation5], 0
      %s41 = sshll.u32 %s3, 4
      %s42 = int_to_ptr.hbm [resolvable:$true] %s41
      %s43 = sshll.u32 [#allocation6], 4
      %s44 = int_to_ptr.vmem [resolvable:$true] %s43
      %49 = dma.hbm_to_vmem [thread:$0]  %s42, 2048, %s44, [#allocation5], 64, 64, 4
    $region17: #{forward.1} parent=1 // pred_fallthru
      _
    // Predicated region
    $region18: #{forward.1} parent=1 // pred_check
      _
    $region19: #{forward.1} parent=1 // pred_check_branch
      %51 = sbr.rel (0) target = $region21
    $region20: #{forward.1} parent=1 // pred_region
      %53 = vsyncadd [#allocation8], 0
      %s55 = sshll.u32 %s4, 4
      %s56 = int_to_ptr.hbm [resolvable:$true] %s55
      %s57 = sshll.u32 [#allocation7], 4
      %s58 = int_to_ptr.vmem [resolvable:$true] %s57
      %60 = dma.hbm_to_vmem [thread:$0]  %s56, 128, %s58, [#allocation8]
    $region21: #{forward.1} parent=1 // pred_fallthru
      _
    // Predicated region
    $region22: #{forward.1} parent=1 // pred_check
      _
    $region23: #{forward.1} parent=1 // pred_check_branch
      %62 = sbr.rel (0) target = $region25
    $region24: #{forward.1} parent=1 // pred_region
      %64 = dma.done [#allocation3], 32
    $region25: #{forward.1} parent=1 // pred_fallthru
      _
    // Predicated region
    $region26: #{forward.1} parent=1 // pred_check
      _
    $region27: #{forward.1} parent=1 // pred_check_branch
      %66 = sbr.rel (0) target = $region29
    $region28: #{forward.1} parent=1 // pred_region
      %68 = dma.done [#allocation5], 32
    $region29: #{forward.1} parent=1 // pred_fallthru
      _
    // Predicated region
    $region30: #{forward.1} parent=1 // pred_check
      _
    $region31: #{forward.1} parent=1 // pred_check_branch
      %70 = sbr.rel (0) target = $region33
    $region32: #{forward.1} parent=1 // pred_region
      %72 = dma.done [#allocation5], 2048
    $region33: #{forward.1} parent=1 // pred_fallthru
      _
    // Predicated region
    $region34: #{forward.1} parent=1 // pred_check
      _
    $region35: #{forward.1} parent=1 // pred_check_branch
      %74 = sbr.rel (0) target = $region37
    $region36: #{forward.1} parent=1 // pred_region
      %76 = dma.done [#allocation8], 128
    $region37: #{forward.1} parent=1 // pred_fallthru
      _
    %v77 = vld [vmem:[#allocation6] sm:$0xf]
    %v78 = vld [vmem:[#allocation6 + $0x4] sm:$0xf]
    %v79 = vld [vmem:[#allocation6 + $0x8] sm:$0xf]
    %v80 = vld [vmem:[#allocation6 + $0xc] sm:$0xf]
    %v81 = vld [vmem:[#allocation6 + $0x10] sm:$0xf]
    %v82 = vunpack.c.l.bf16 %v77
    %v83 = vunpack.c.l.bf16 %v78
    %v84 = vunpack.c.l.bf16 %v79
    %v85 = vunpack.c.l.bf16 %v80
    %v86 = vunpack.c.l.bf16 %v81
    %v87 = vld [vmem:[#allocation6 + $0x18] sm:$0xf]
    %v88 = vld [vmem:[#allocation6 + $0x1c] sm:$0xf]
    %v89 = vld [vmem:[#allocation6 + $0x20] sm:$0xf]
    %v90 = vunpack.c.l.bf16 %v87
    %v91 = vunpack.c.l.bf16 %v88
    %v92 = vunpack.c.l.bf16 %v89
    %v93 = vld [vmem:[#allocation6 + $0x28] sm:$0xf]
    %v94 = vld [vmem:[#allocation6 + $0x2c] sm:$0xf]
    %v95 = vunpack.c.l.bf16 %v93
    %v96 = vunpack.c.l.bf16 %v94
    %v97 = vld [vmem:[#allocation6 + $0x30] sm:$0xf]
    %v98 = vld [vmem:[#allocation6 + $0x34] sm:$0xf]
    %v99 = vld [vmem:[#allocation6 + $0x38] sm:$0xf]
    %v100 = vld [vmem:[#allocation6 + $0x3c] sm:$0xf]
    %v101 = vld [vmem:[#allocation6 + $0x40] sm:$0xf]
    %v102 = vld [vmem:[#allocation6 + $0x44] sm:$0xf]
    %v103 = vld [vmem:[#allocation6 + $0x48] sm:$0xf]
    %v104 = vld [vmem:[#allocation6 + $0x4c] sm:$0xf]
    %v105 = vld [vmem:[#allocation6 + $0x50] sm:$0xf]
    %v106 = vld [vmem:[#allocation6 + $0x54] sm:$0xf]
    %v107 = vld [vmem:[#allocation6 + $0x58] sm:$0xf]
    %v108 = vld [vmem:[#allocation6 + $0x5c] sm:$0xf]
    %v109 = vunpack.c.l.bf16 %v97
    %v110 = vunpack.c.l.bf16 %v98
    %v111 = vunpack.c.l.bf16 %v99
    %v112 = vunpack.c.l.bf16 %v100
    %v113 = vunpack.c.l.bf16 %v101
    %v114 = vunpack.c.l.bf16 %v102
    %v115 = vunpack.c.l.bf16 %v103
    %v116 = vunpack.c.l.bf16 %v104
    %v117 = vunpack.c.l.bf16 %v105
    %v118 = vunpack.c.l.bf16 %v106
    %v119 = vunpack.c.l.bf16 %v107
    %v120 = vunpack.c.l.bf16 %v108
    %v121 = vld [vmem:[#allocation6 + $0x60] sm:$0xf]
    %v122 = vld [vmem:[#allocation6 + $0x64] sm:$0xf]
    %v123 = vld [vmem:[#allocation6 + $0x68] sm:$0xf]
    %v124 = vld [vmem:[#allocation6 + $0x6c] sm:$0xf]
    %v125 = vld [vmem:[#allocation6 + $0x70] sm:$0xf]
    %v126 = vld [vmem:[#allocation6 + $0x74] sm:$0xf]
    %v127 = vld [vmem:[#allocation6 + $0x78] sm:$0xf]
    %v128 = vld [vmem:[#allocation6 + $0x7c] sm:$0xf]
    %v129 = vunpack.c.l.bf16 %v121
    %v130 = vunpack.c.l.bf16 %v122
    %v131 = vunpack.c.l.bf16 %v123
    %v132 = vunpack.c.l.bf16 %v124
    %v133 = vunpack.c.l.bf16 %v125
    %v134 = vunpack.c.l.bf16 %v126
    %v135 = vunpack.c.l.bf16 %v127
    %v136 = vunpack.c.l.bf16 %v128
    %v137 = vld [vmem:[#allocation7] sm:$0x1]
    %v138 = vld [vmem:[#allocation7 + $0x1] sm:$0x1]
    %v139 = vld [vmem:[#allocation7 + $0x2] sm:$0x1]
    %v140 = vld [vmem:[#allocation7 + $0x3] sm:$0x1]
    %v141 = vld [vmem:[#allocation7 + $0x4] sm:$0x1]
    %v142 = vld [vmem:[#allocation7 + $0x5] sm:$0x1]
    %v143 = vld [vmem:[#allocation7 + $0x6] sm:$0x1]
    %v144 = vld [vmem:[#allocation7 + $0x7] sm:$0x1]
    %v145 = vld [vmem:[#allocation2] sm:$0x3]
    %v146 = vld [vmem:[%s1] sm:$0x3]
    %v147 = vld [vmem:[#allocation4] sm:$0x3]
    %vm148 = vcmask 195584
    %v150 = vsel %vm148, %v146, 0
    %152 = vmatpush.msra.mxu0 0.0
    %153 = vmatpush.msra.mxu0 0.0
    %154 = vmatpush.msra.mxu0 0.0
    %155 = vmatpush.msra.mxu0 0.0
    %156 = vmatpush.msra.mxu0 0.0
    %157 = vmatpush.msra.mxu0 0.0
    %158 = vmatpush.msra.mxu0 0.0
    %159 = vmatpush.msra.mxu0 0.0
    %160 = vmatpush.msra.mxu0 0.0
    %161 = vmatpush.msra.mxu0 0.0
    %162 = vmatpush.msra.mxu0 0.0
    %163 = vmatpush.msra.mxu0 0.0
    %164 = vmatpush.msra.mxu0 0.0
    %165 = vmatpush.msra.mxu0 %v92
    %166 = vmatpush.msra.mxu0 %v91
    %167 = vmatpush.msra.mxu0 %v90
    %168 = vmatmul.f32.gmra.mxu0 %v150
    %v169 = vpop.f32.mrf.mxu0
    %v170 = vadd.f32 0.0, %v169
    %171 = vdwg.mxu0
    %vm172 = vcmask 326656
    %v174 = vsel %vm172, %v145, 0
    %176 = vmatpush.msra.mxu0 0.0
    %177 = vmatpush.msra.mxu0 0.0
    %178 = vmatpush.msra.mxu0 0.0
    %179 = vmatpush.msra.mxu0 0.0
    %180 = vmatpush.msra.mxu0 0.0
    %181 = vmatpush.msra.mxu0 0.0
    %182 = vmatpush.msra.mxu0 0.0
    %183 = vmatpush.msra.mxu0 0.0
    %184 = vmatpush.msra.mxu0 0.0
    %185 = vmatpush.msra.mxu0 0.0
    %186 = vmatpush.msra.mxu0 0.0
    %187 = vmatpush.msra.mxu0 %v86
    %188 = vmatpush.msra.mxu0 %v85
    %189 = vmatpush.msra.mxu0 %v84
    %190 = vmatpush.msra.mxu0 %v83
    %191 = vmatpush.msra.mxu0 %v82
    %192 = vmatmul.f32.gmra.mxu0 %v174
    %v193 = vpop.f32.mrf.mxu0
    %v194 = vadd.f32 %v170, %v193
    %195 = vdwg.mxu0
    %vm196 = vcmask 130048
    %v198 = vsel %vm196, %v147, 0
    %200 = vmatpush.msra.mxu0 0.0
    %201 = vmatpush.msra.mxu0 0.0
    %202 = vmatpush.msra.mxu0 0.0
    %203 = vmatpush.msra.mxu0 0.0
    %204 = vmatpush.msra.mxu0 0.0
    %205 = vmatpush.msra.mxu0 0.0
    %206 = vmatpush.msra.mxu0 0.0
    %207 = vmatpush.msra.mxu0 0.0
    %208 = vmatpush.msra.mxu0 0.0
    %209 = vmatpush.msra.mxu0 0.0
    %210 = vmatpush.msra.mxu0 0.0
    %211 = vmatpush.msra.mxu0 0.0
    %212 = vmatpush.msra.mxu0 0.0
    %213 = vmatpush.msra.mxu0 0.0
    %214 = vmatpush.msra.mxu0 %v96
    %215 = vmatpush.msra.mxu0 %v95
    %216 = vmatmul.f32.gmra.mxu0 %v198
    %v217 = vpop.f32.mrf.mxu0
    %v218 = vadd.f32 0.0, %v217
    %219 = vdwg.mxu0
    %v220 = vadd.f32 %v194, %v218
    %v221 = vperm.slane %v137, 0
    %v222 = vadd.f32 %v220, %v221
    %v223 = vperm.slane %v138, 0
    %vm224 = vcmask 785408
    %v226 = vsel %vm224, %v222, 0
    %228 = vmatpush.msra.mxu0 0.0
    %229 = vmatpush.msra.mxu0 0.0
    %230 = vmatpush.msra.mxu0 0.0
    %231 = vmatpush.msra.mxu0 0.0
    %232 = vmatpush.msra.mxu0 %v120
    %233 = vmatpush.msra.mxu0 %v119
    %234 = vmatpush.msra.mxu0 %v118
    %235 = vmatpush.msra.mxu0 %v117
    %236 = vmatpush.msra.mxu0 %v116
    %237 = vmatpush.msra.mxu0 %v115
    %238 = vmatpush.msra.mxu0 %v114
    %239 = vmatpush.msra.mxu0 %v113
    %240 = vmatpush.msra.mxu0 %v112
    %241 = vmatpush.msra.mxu0 %v111
    %242 = vmatpush.msra.mxu0 %v110
    %243 = vmatpush.msra.mxu0 %v109
    %244 = vmatmul.f32.gmra.mxu0 %v226
    %v245 = vpop.f32.mrf.mxu0
    %v246 = vadd.f32 %v223, %v245
    %247 = vdwg.mxu0
    %vm248 = vcmask 517120
    %v249 = vsel %vm248, %v246, 0.0
    %250 = vadd.xlane.f32.xlu0 %v249
    %v251 = vpop.xlane.xlu0 %250
    %v252 = vrcp.pop 64.0
    %v253 = vmul.f32 64.0, %v252
    %v254 = vsub.f32 1.0, %v253
    %v255 = vmul.f32 %v252, %v254
    %v256 = vadd.f32 %v252, %v255
    %vm257 = vweird.f32 %v252
    %v258 = vsel %vm257, %v252, %v256
    %v259 = vmul.f32 %v251, %v258
    %v260 = vsub.f32 %v246, %v259
    %v261 = vmul.f32 %v260, %v260
    %v262 = vsel %vm248, %v261, 0.0
    %263 = vadd.xlane.f32.xlu0 %v262
    %v264 = vpop.xlane.xlu0 %263
    %v265 = vmul.f32 %v264, %v258
    %v266 = vadd.f32 %v265, 1e-05
    %v267 = vrsqrt.pop %v266
    %v268 = vmul.f32 %v267, %v266
    %v269 = vmul.f32 %v268, %v267
    %v270 = vmul.f32 0.5, %v269
    %v271 = vsub.f32 1.5, %v270
    %v272 = vmul.f32 %v267, %v271
    %vm273 = vweird.f32 %v266
    %vm274 = vweird.f32 %v267
    %vm275 = vmor %vm273, %vm274
    %v276 = vsel %vm275, %v267, %v272
    %v277 = vmul.f32 %v260, %v276
    %v278 = vperm.slane %v139, 0
    %v279 = vmul.f32 %v277, %v278
    %v280 = vperm.slane %v140, 0
    %v281 = vadd.f32 %v279, %v280
    %v282 = vmax.f32 %v281, 0.0
    %v283 = vperm.slane %v141, 0
    %vm284 = vcmask 523264
    %v286 = vsel %vm284, %v282, 0
    %288 = vmatpush.msra.mxu0 0.0
    %289 = vmatpush.msra.mxu0 0.0
    %290 = vmatpush.msra.mxu0 0.0
    %291 = vmatpush.msra.mxu0 0.0
    %292 = vmatpush.msra.mxu0 0.0
    %293 = vmatpush.msra.mxu0 0.0
    %294 = vmatpush.msra.mxu0 0.0
    %295 = vmatpush.msra.mxu0 0.0
    %296 = vmatpush.msra.mxu0 %v136
    %297 = vmatpush.msra.mxu0 %v135
    %298 = vmatpush.msra.mxu0 %v134
    %299 = vmatpush.msra.mxu0 %v133
    %300 = vmatpush.msra.mxu0 %v132
    %301 = vmatpush.msra.mxu0 %v131
    %302 = vmatpush.msra.mxu0 %v130
    %303 = vmatpush.msra.mxu0 %v129
    %304 = vmatmul.f32.gmra.mxu0 %v286
    %v305 = vpop.f32.mrf.mxu0
    %v306 = vadd.f32 %v283, %v305
    %307 = vdwg.mxu0
    %vm308 = vcmask 254976
    %v309 = vsel %vm308, %v306, 0.0
    %310 = vadd.xlane.f32.xlu0 %v309
    %v311 = vpop.xlane.xlu0 %310
    %v312 = vrcp.pop 32.0
    %v313 = vmul.f32 32.0, %v312
    %v314 = vsub.f32 1.0, %v313
    %v315 = vmul.f32 %v312, %v314
    %v316 = vadd.f32 %v312, %v315
    %vm317 = vweird.f32 %v312
    %v318 = vsel %vm317, %v312, %v316
    %v319 = vmul.f32 %v311, %v318
    %v320 = vsub.f32 %v306, %v319
    %v321 = vmul.f32 %v320, %v320
    %v322 = vsel %vm308, %v321, 0.0
    %323 = vadd.xlane.f32.xlu0 %v322
    %v324 = vpop.xlane.xlu0 %323
    %v325 = vmul.f32 %v324, %v318
    %v326 = vadd.f32 %v325, 1e-05
    %v327 = vrsqrt.pop %v326
    %v328 = vmul.f32 %v327, %v326
    %v329 = vmul.f32 %v328, %v327
    %v330 = vmul.f32 0.5, %v329
    %v331 = vsub.f32 1.5, %v330
    %v332 = vmul.f32 %v327, %v331
    %vm333 = vweird.f32 %v326
    %vm334 = vweird.f32 %v327
    %vm335 = vmor %vm333, %vm334
    %v336 = vsel %vm335, %v327, %v332
    %v337 = vmul.f32 %v320, %v336
    %v338 = vperm.slane %v142, 0
    %v339 = vmul.f32 %v337, %v338
    %v340 = vperm.slane %v143, 0
    %v341 = vadd.f32 %v339, %v340
    %v342 = vmax.f32 %v341, 0.0
    %v343 = vperm.slane %v144, 0
    %v344 = vmul.f32 %v342, %v343
    %v345 = vsel %vm308, %v344, 0.0
    %346 = vadd.xlane.f32.xlu0 %v345
    %v347 = vpop.xlane.xlu0 %346
    %v348 = vadd.f32 %v347, %v343
    %vm349 = vcmask 261120
    %v350 = vsel %vm349, %v342, %v348
    %vm351 = vcmask 269312
    %v352 = vsel %vm351, %v350, 0.0
    %353 = vst [vmem:[%s5] sm:$0x3] %v352
    // Predicated region
    $region38: #{forward.1} parent=1 // pred_check
      _
    $region39: #{forward.1} parent=1 // pred_check_branch
      %355 = sbr.rel (0) target = $region41
    $region40: #{forward.1} parent=1 // pred_region
      _
    $region41: #{forward.1} parent=1 // pred_fallthru
      _
    // Predicated region
    $region42: #{forward.1} parent=1 // pred_check
      _
    $region43: #{forward.1} parent=1 // pred_check_branch
      %357 = sbr.rel (0) target = $region45
    $region44: #{forward.1} parent=1 // pred_region
      _
    $region45: #{forward.1} parent=1 // pred_fallthru
      _
    %358 = vsyncpa [#allocation3], 1
    %359 = vsyncpa [#allocation5], 1
    %360 = vsyncpa [#allocation8], 1

</llo_original>
